<compile_context>
chip_gen: v7x
topology: tpu7x:2x2x1
jax: 0.10.0
libtpu: 0.0.40
codegen_flags: <defaults>
</compile_context>

<pallas_src>
import jax
import jax.numpy as jnp
from jax.experimental import pallas as pl
from jax.experimental.pallas import tpu as pltpu


def _round_up(n: int, m: int) -> int:
    return ((n + m - 1) // m) * m


def _encoder_kernel(x_ref,
                    w1_ref, b1_ref,
                    w2_ref, b2_ref,
                    w3_ref, b3_ref,
                    w4_ref, b4_ref,
                    out_ref):
    """Fused 4-layer MLP: tanh(xW1+b1) -> tanh(.W2+b2) -> tanh(.W3+b3) -> .W4+b4.

    The last layer is one MXU pass into a single lane-dense (tb, out_pad) slab;
    mu/logvar are sliced out of the HBM result by the wrapper.
    """
    # TODO(synk): nn.Dropout is identity in eval mode; training-mode dropout
    # (Bernoulli masking via pltpu.prng_*) is not implemented here.
    cdt = w1_ref.dtype                     # MXU operand dtype (f32 or bf16)
    fuse_cast = cdt != jnp.float32         # bf16: downcast before tanh (bf16 EUP on v6e/v7x)

    def layer(h, w_ref, b_ref):
        acc = jnp.dot(h, w_ref[...], preferred_element_type=jnp.float32) + b_ref[...]
        if fuse_cast:
            # cast happens anyway before the next MXU op; doing it before tanh
            # uses the bf16 VPU/EUP path and halves the vreg footprint of h.
            return jnp.tanh(acc.astype(cdt))
        return jnp.tanh(acc)

    h = layer(x_ref[...], w1_ref, b1_ref)
    h = layer(h.astype(cdt), w2_ref, b2_ref)
    h = layer(h.astype(cdt), w3_ref, b3_ref)
    out_ref[...] = (jnp.dot(h.astype(cdt), w4_ref[...],
                            preferred_element_type=jnp.float32)
                    + b4_ref[...]).astype(out_ref.dtype)


def prepare_encoder_params(params, latent_dim, compute_dtype=jnp.float32):
    """Pre-cast / pre-pad the weights ONCE (outside the per-call path).

    bf16 operands are the MXU-native fast path on v5e/v6e/v7x and halve weight
    HBM/VMEM bytes; biases / accumulation stay f32.  W4 is zero-padded on its
    output columns to a lane-dense multiple of 128.
    """
    (w1, b1), (w2, b2), (w3, b3), (w4, b4) = params
    cdt = jax.dtypes.canonicalize_dtype(compute_dtype)
    out_dim = w4.shape[1]
    assert out_dim == 2 * latent_dim
    out_pad = _round_up(max(out_dim, 128), 128)      # lane-dense output slab
    pad = out_pad - out_dim
    if pad:
        w4 = jnp.pad(w4, ((0, 0), (0, pad)))
        b4 = jnp.pad(jnp.reshape(b4, (1, -1)), ((0, 0), (0, pad)))
    weights = tuple(w.astype(cdt) for w in (w1, w2, w3, w4))
    biases = tuple(jnp.reshape(b, (1, -1)).astype(jnp.float32)
                   for b in (b1, b2, b3, b4))
    return {
        "weights": weights, "biases": biases,
        "latent_dim": int(latent_dim), "out_pad": int(out_pad),
        "compute_dtype": cdt,
        "input_dim": int(w1.shape[0]), "hidden_dim": int(w1.shape[1]),
    }


def encoder_subnet_forward(x, prepared, *, batch_tile=1024, vmem_fraction=0.6):
    """Pallas forward pass of EncoderSubnet. Returns (mu, logvar)."""
    # PyTorch: if x.dtype == int64 -> float
    if jnp.issubdtype(x.dtype, jnp.integer):
        x = x.astype(jnp.float32)

    cdt = prepared["compute_dtype"]
    w1, w2, w3, w4 = prepared["weights"]
    b1, b2, b3, b4 = prepared["biases"]
    latent_dim = prepared["latent_dim"]
    out_pad = prepared["out_pad"]
    input_dim = prepared["input_dim"]
    hidden_dim = prepared["hidden_dim"]

    B, xdim = x.shape
    assert xdim == input_dim
    xc = x.astype(cdt)

    # ---- generation-aware VMEM budget -------------------------------------
    try:
        vmem_cap = int(pltpu.get_tpu_info().vmem_capacity_bytes)
    except Exception:
        vmem_cap = 64 * 1024 * 1024          # conservative (v7x physical)
    vmem_budget = int(vmem_fraction * vmem_cap)

    weight_bytes = sum(int(a.size) * a.dtype.itemsize
                       for a in (w1, w2, w3, w4, b1, b2, b3, b4))

    # ---- batch-tile selection ---------------------------------------------
    # Large sublane-dense tiles amortize the ~0.35 us / grid-step overhead.
    # Cap so that B (when large enough) splits into >= 2 "parallel" grid steps
    # and v7x's two TensorCores both get work; shrink only if VMEM-bound.
    sub = 16
    tb = min(_round_up(batch_tile, sub), _round_up(B, sub))
    tb = min(tb, max(sub, _round_up(pl.cdiv(B, 2), sub)))

    def vmem_est(t):
        acts = t * 3 * hidden_dim * 4                               # f32 temps
        io = 2 * t * input_dim * cdt.itemsize + 2 * t * out_pad * 4  # dbl-buffered x / out
        return weight_bytes + acts + io      # weights single-buffered (Buffered(1))

    while tb > sub and vmem_est(tb) > vmem_budget:
        tb = max(sub, _round_up(tb // 2, sub))

    B_pad = _round_up(B, tb)
    if B_pad != B:                            # ragged batch: zero-pad, slice after
        xc = jnp.pad(xc, ((0, B_pad - B), (0, 0)))
    grid = (B_pad // tb,)

    cost = pl.CostEstimate(
        flops=int(2 * B_pad * (input_dim * hidden_dim
                               + 2 * hidden_dim * hidden_dim
                               + hidden_dim * out_pad)),
        transcendentals=int(3 * B_pad * hidden_dim),
        bytes_accessed=int(B_pad * input_dim * cdt.itemsize + weight_bytes
                           + B_pad * out_pad * 4),
    )

    # Limit stays comfortably above the estimate and below 0.75x physical VMEM.
    vmem_limit = int(min(max(2 * vmem_est(tb), 16 * 1024 * 1024),
                         int(0.75 * vmem_cap)))

    rep = lambda i: (0, 0)                    # grid-invariant weight / bias blocks
    buffered = getattr(pl, "Buffered", None)

    def weight_spec(shape, single):
        if single and buffered is not None:
            return pl.BlockSpec(shape, rep, pipeline_mode=buffered(1))
        return pl.BlockSpec(shape, rep)

    def run(single_buffer_weights):
        in_specs = [pl.BlockSpec((tb, input_dim), lambda i: (i, 0))]   # x tile
        for w, b in ((w1, b1), (w2, b2), (w3, b3), (w4, b4)):
            in_specs.append(weight_spec(w.shape, single_buffer_weights))
            in_specs.append(weight_spec(b.shape, single_buffer_weights))
        return pl.pallas_call(
            _encoder_kernel,
            out_shape=jax.ShapeDtypeStruct((B_pad, out_pad), jnp.float32),
            grid=grid,
            in_specs=in_specs,
            out_specs=pl.BlockSpec((tb, out_pad), lambda i: (i, 0)),
            compiler_params=pltpu.CompilerParams(
                dimension_semantics=("parallel",),   # megacore-shard batch steps
                vmem_limit_bytes=vmem_limit),
            cost_estimate=cost,
        )(xc, w1, b1, w2, b2, w3, b3, w4, b4)

    try:
        out = run(True)
    except Exception:
        # Fallback if this JAX build rejects pipeline_mode=pl.Buffered(1).
        out = run(False)

    mu = out[:B, :latent_dim]
    logvar = out[:B, latent_dim:2 * latent_dim]
    return mu, logvar


def init_encoder_params(key, input_dim, hidden_dim, latent_dim):
    """Deterministic PyTorch-Linear-style init: U(-1/sqrt(fan_in), 1/sqrt(fan_in))."""
    dims = [(input_dim, hidden_dim),
            (hidden_dim, hidden_dim),
            (hidden_dim, hidden_dim),
            (hidden_dim, 2 * latent_dim)]
    params = []
    for (fan_in, fan_out) in dims:
        key, kw, kb = jax.random.split(key, 3)
        bound = 1.0 / jnp.sqrt(fan_in)
        w = jax.random.uniform(kw, (fan_in, fan_out), jnp.float32, -bound, bound)
        b = jax.random.uniform(kb, (1, fan_out), jnp.float32, -bound, bound)
        params.append((w, b))
    return params


if __name__ == "__main__":
    # small shapes consistent with the module
    B = 16
    input_dim = 32
    hidden_dim = 32
    latent_dim = 8

    key = jax.random.PRNGKey(0)
    key, kx = jax.random.split(key)
    x = jax.random.normal(kx, (B, input_dim), jnp.float32)
    params = init_encoder_params(key, input_dim, hidden_dim, latent_dim)

    # --- plain-JAX reference ------------------------------------------------
    def ref(x, params):
        (w1, b1), (w2, b2), (w3, b3), (w4, b4) = params
        h = jnp.tanh(x @ w1 + b1)
        h = jnp.tanh(h @ w2 + b2)
        h = jnp.tanh(h @ w3 + b3)
        ml = h @ w4 + b4
        return ml[:, :latent_dim], ml[:, latent_dim:]

    mu_ref, lv_ref = ref(x, params)

    # --- f32 path (exact module semantics); params prepared once ------------
    prep_f32 = prepare_encoder_params(params, latent_dim, jnp.float32)
    mu, logvar = encoder_subnet_forward(x, prep_f32)
    jax.block_until_ready((mu, logvar))
    assert mu.shape == (B, latent_dim) and logvar.shape == (B, latent_dim)
    assert jnp.allclose(mu, mu_ref, atol=1e-5), "mu mismatch (f32)"
    assert jnp.allclose(logvar, lv_ref, atol=1e-5), "logvar mismatch (f32)"

    # --- bf16 MXU-operand path (fast path on v5e/v6e/v7x, f32 accumulate) ---
    prep_bf16 = prepare_encoder_params(params, latent_dim, jnp.bfloat16)
    mu_b, lv_b = encoder_subnet_forward(x, prep_bf16)
    jax.block_until_ready((mu_b, lv_b))
    assert jnp.allclose(mu_b, mu_ref, atol=1e-1), "mu mismatch (bf16)"
    assert jnp.allclose(lv_b, lv_ref, atol=1e-1), "logvar mismatch (bf16)"

    # --- ragged batch (B not a multiple of the tile) exercises zero-padding --
    mu_r, lv_r = encoder_subnet_forward(x[:13], prep_f32)
    jax.block_until_ready((mu_r, lv_r))
    assert mu_r.shape == (13, latent_dim) and lv_r.shape == (13, latent_dim)
    assert jnp.allclose(mu_r, mu_ref[:13], atol=1e-5), "mu mismatch (ragged)"
    assert jnp.allclose(lv_r, lv_ref[:13], atol=1e-5), "logvar mismatch (ragged)"

    print("KERNEL_OK")
</pallas_src>

<mosaic_0001>
module attributes {stable_mosaic.version = 11 : i64} {
  func.func @_encoder_kernel(%arg0: i32, %arg1: memref<16x32xf32, #tpu.memory_space<vmem>>, %arg2: memref<32x32xf32, #tpu.memory_space<vmem>>, %arg3: memref<1x32xf32, #tpu.memory_space<vmem>>, %arg4: memref<32x32xf32, #tpu.memory_space<vmem>>, %arg5: memref<1x32xf32, #tpu.memory_space<vmem>>, %arg6: memref<32x32xf32, #tpu.memory_space<vmem>>, %arg7: memref<1x32xf32, #tpu.memory_space<vmem>>, %arg8: memref<32x128xf32, #tpu.memory_space<vmem>>, %arg9: memref<1x128xf32, #tpu.memory_space<vmem>>, %arg10: memref<16x128xf32, #tpu.memory_space<vmem>>) attributes {dimension_semantics = [#tpu.dimension_semantics<parallel>], iteration_bounds = array<i64: 1>, scalar_prefetch = 0 : i64, scratch_operands = 0 : i64, tpu.core_type = #tpu.core_type<tc>, window_params = [{transform_indices = @transform_0, window_bounds = array<i64: 16, 32>}, {pipeline_mode = #tpu.pipeline_mode<synchronous>, transform_indices = @transform_1, window_bounds = array<i64: 32, 32>}, {pipeline_mode = #tpu.pipeline_mode<synchronous>, transform_indices = @transform_2, window_bounds = array<i64: 1, 32>}, {pipeline_mode = #tpu.pipeline_mode<synchronous>, transform_indices = @transform_3, window_bounds = array<i64: 32, 32>}, {pipeline_mode = #tpu.pipeline_mode<synchronous>, transform_indices = @transform_4, window_bounds = array<i64: 1, 32>}, {pipeline_mode = #tpu.pipeline_mode<synchronous>, transform_indices = @transform_5, window_bounds = array<i64: 32, 32>}, {pipeline_mode = #tpu.pipeline_mode<synchronous>, transform_indices = @transform_6, window_bounds = array<i64: 1, 32>}, {pipeline_mode = #tpu.pipeline_mode<synchronous>, transform_indices = @transform_7, window_bounds = array<i64: 32, 128>}, {pipeline_mode = #tpu.pipeline_mode<synchronous>, transform_indices = @transform_8, window_bounds = array<i64: 1, 128>}, {transform_indices = @transform_9, window_bounds = array<i64: 16, 128>}]} {
    %c0 = arith.constant 0 : index
    %c0_0 = arith.constant 0 : index
    %0 = vector.load %arg1[%c0, %c0_0] : memref<16x32xf32, #tpu.memory_space<vmem>>, vector<16x32xf32>
    %c0_1 = arith.constant 0 : index
    %c0_2 = arith.constant 0 : index
    %1 = vector.load %arg2[%c0_1, %c0_2] : memref<32x32xf32, #tpu.memory_space<vmem>>, vector<32x32xf32>
    %cst = arith.constant dense<0.000000e+00> : vector<16x32xf32>
    %2 = tpu.matmul %0, %1, %cst {dimension_numbers = #tpu.dot_dimension_numbers<[1], [0], [0], [1], [0, 0, 1, 1], [], []>} : vector<16x32xf32>, vector<32x32xf32>, vector<16x32xf32> -> vector<16x32xf32>
    %c0_3 = arith.constant 0 : index
    %c0_4 = arith.constant 0 : index
    %3 = vector.load %arg3[%c0_3, %c0_4] : memref<1x32xf32, #tpu.memory_space<vmem>>, vector<1x32xf32>
    %4 = vector.broadcast %3 : vector<1x32xf32> to vector<16x32xf32>
    %5 = arith.addf %2, %4 : vector<16x32xf32>
    %6 = math.tanh %5 : vector<16x32xf32>
    %c0_5 = arith.constant 0 : index
    %c0_6 = arith.constant 0 : index
    %7 = vector.load %arg4[%c0_5, %c0_6] : memref<32x32xf32, #tpu.memory_space<vmem>>, vector<32x32xf32>
    %cst_7 = arith.constant dense<0.000000e+00> : vector<16x32xf32>
    %8 = tpu.matmul %6, %7, %cst_7 {dimension_numbers = #tpu.dot_dimension_numbers<[1], [0], [0], [1], [0, 0, 1, 1], [], []>} : vector<16x32xf32>, vector<32x32xf32>, vector<16x32xf32> -> vector<16x32xf32>
    %c0_8 = arith.constant 0 : index
    %c0_9 = arith.constant 0 : index
    %9 = vector.load %arg5[%c0_8, %c0_9] : memref<1x32xf32, #tpu.memory_space<vmem>>, vector<1x32xf32>
    %10 = vector.broadcast %9 : vector<1x32xf32> to vector<16x32xf32>
    %11 = arith.addf %8, %10 : vector<16x32xf32>
    %12 = math.tanh %11 : vector<16x32xf32>
    %c0_10 = arith.constant 0 : index
    %c0_11 = arith.constant 0 : index
    %13 = vector.load %arg6[%c0_10, %c0_11] : memref<32x32xf32, #tpu.memory_space<vmem>>, vector<32x32xf32>
    %cst_12 = arith.constant dense<0.000000e+00> : vector<16x32xf32>
    %14 = tpu.matmul %12, %13, %cst_12 {dimension_numbers = #tpu.dot_dimension_numbers<[1], [0], [0], [1], [0, 0, 1, 1], [], []>} : vector<16x32xf32>, vector<32x32xf32>, vector<16x32xf32> -> vector<16x32xf32>
    %c0_13 = arith.constant 0 : index
    %c0_14 = arith.constant 0 : index
    %15 = vector.load %arg7[%c0_13, %c0_14] : memref<1x32xf32, #tpu.memory_space<vmem>>, vector<1x32xf32>
    %16 = vector.broadcast %15 : vector<1x32xf32> to vector<16x32xf32>
    %17 = arith.addf %14, %16 : vector<16x32xf32>
    %18 = math.tanh %17 : vector<16x32xf32>
    %c0_15 = arith.constant 0 : index
    %c0_16 = arith.constant 0 : index
    %19 = vector.load %arg8[%c0_15, %c0_16] : memref<32x128xf32, #tpu.memory_space<vmem>>, vector<32x128xf32>
    %cst_17 = arith.constant dense<0.000000e+00> : vector<16x128xf32>
    %20 = tpu.matmul %18, %19, %cst_17 {dimension_numbers = #tpu.dot_dimension_numbers<[1], [0], [0], [1], [0, 0, 1, 1], [], []>} : vector<16x32xf32>, vector<32x128xf32>, vector<16x128xf32> -> vector<16x128xf32>
    %c0_18 = arith.constant 0 : index
    %c0_19 = arith.constant 0 : index
    %21 = vector.load %arg9[%c0_18, %c0_19] : memref<1x128xf32, #tpu.memory_space<vmem>>, vector<1x128xf32>
    %22 = vector.broadcast %21 : vector<1x128xf32> to vector<16x128xf32>
    %23 = arith.addf %20, %22 : vector<16x128xf32>
    %c0_20 = arith.constant 0 : index
    %c0_21 = arith.constant 0 : index
    %24 = vector.load %arg10[%c0_20, %c0_21] : memref<16x128xf32, #tpu.memory_space<vmem>>, vector<16x128xf32>
    tpu.vector_store %arg10[%c0_20, %c0_21], %23 {strides = array<i32>} : memref<16x128xf32, #tpu.memory_space<vmem>>, vector<16x128xf32>,
    return
  }
  func.func @transform_0(%arg0: i32) -> (i32, i32) {
    %c0_i32 = arith.constant 0 : i32
    %c0_i32_0 = arith.constant 0 : i32
    return %arg0, %c0_i32 : i32, i32
  }
  func.func @transform_1(%arg0: i32) -> (i32, i32) {
    %c0_i32 = arith.constant 0 : i32
    %c0_i32_0 = arith.constant 0 : i32
    %c0_i32_1 = arith.constant 0 : i32
    return %c0_i32, %c0_i32_0 : i32, i32
  }
  func.func @transform_2(%arg0: i32) -> (i32, i32) {
    %c0_i32 = arith.constant 0 : i32
    %c0_i32_0 = arith.constant 0 : i32
    %c0_i32_1 = arith.constant 0 : i32
    return %c0_i32, %c0_i32_0 : i32, i32
  }
  func.func @transform_3(%arg0: i32) -> (i32, i32) {
    %c0_i32 = arith.constant 0 : i32
    %c0_i32_0 = arith.constant 0 : i32
    %c0_i32_1 = arith.constant 0 : i32
    return %c0_i32, %c0_i32_0 : i32, i32
  }
  func.func @transform_4(%arg0: i32) -> (i32, i32) {
    %c0_i32 = arith.constant 0 : i32
    %c0_i32_0 = arith.constant 0 : i32
    %c0_i32_1 = arith.constant 0 : i32
    return %c0_i32, %c0_i32_0 : i32, i32
  }
  func.func @transform_5(%arg0: i32) -> (i32, i32) {
    %c0_i32 = arith.constant 0 : i32
    %c0_i32_0 = arith.constant 0 : i32
    %c0_i32_1 = arith.constant 0 : i32
    return %c0_i32, %c0_i32_0 : i32, i32
  }
  func.func @transform_6(%arg0: i32) -> (i32, i32) {
    %c0_i32 = arith.constant 0 : i32
    %c0_i32_0 = arith.constant 0 : i32
    %c0_i32_1 = arith.constant 0 : i32
    return %c0_i32, %c0_i32_0 : i32, i32
  }
  func.func @transform_7(%arg0: i32) -> (i32, i32) {
    %c0_i32 = arith.constant 0 : i32
    %c0_i32_0 = arith.constant 0 : i32
    %c0_i32_1 = arith.constant 0 : i32
    return %c0_i32, %c0_i32_0 : i32, i32
  }
  func.func @transform_8(%arg0: i32) -> (i32, i32) {
    %c0_i32 = arith.constant 0 : i32
    %c0_i32_0 = arith.constant 0 : i32
    %c0_i32_1 = arith.constant 0 : i32
    return %c0_i32, %c0_i32_0 : i32, i32
  }
  func.func @transform_9(%arg0: i32) -> (i32, i32) {
    %c0_i32 = arith.constant 0 : i32
    %c0_i32_0 = arith.constant 0 : i32
    return %arg0, %c0_i32 : i32, i32
  }
}

module attributes {stable_mosaic.version = 11 : i64} {
  func.func @_encoder_kernel(%arg0: i32, %arg1: memref<16x32xf32, #tpu.memory_space<vmem>>, %arg2: memref<32x32xf32, #tpu.memory_space<vmem>>, %arg3: memref<1x32xf32, #tpu.memory_space<vmem>>, %arg4: memref<32x32xf32, #tpu.memory_space<vmem>>, %arg5: memref<1x32xf32, #tpu.memory_space<vmem>>, %arg6: memref<32x32xf32, #tpu.memory_space<vmem>>, %arg7: memref<1x32xf32, #tpu.memory_space<vmem>>, %arg8: memref<32x128xf32, #tpu.memory_space<vmem>>, %arg9: memref<1x128xf32, #tpu.memory_space<vmem>>, %arg10: memref<16x128xf32, #tpu.memory_space<vmem>>) attributes {dimension_semantics = [#tpu.dimension_semantics<parallel>], iteration_bounds = array<i64: 1>, scalar_prefetch = 0 : i64, scratch_operands = 0 : i64, tpu.core_type = #tpu.core_type<tc>, window_params = [{transform_indices = @transform_0, window_bounds = array<i64: 16, 32>}, {pipeline_mode = #tpu.pipeline_mode<synchronous>, transform_indices = @transform_1, window_bounds = array<i64: 32, 32>}, {pipeline_mode = #tpu.pipeline_mode<synchronous>, transform_indices = @transform_2, window_bounds = array<i64: 1, 32>}, {pipeline_mode = #tpu.pipeline_mode<synchronous>, transform_indices = @transform_3, window_bounds = array<i64: 32, 32>}, {pipeline_mode = #tpu.pipeline_mode<synchronous>, transform_indices = @transform_4, window_bounds = array<i64: 1, 32>}, {pipeline_mode = #tpu.pipeline_mode<synchronous>, transform_indices = @transform_5, window_bounds = array<i64: 32, 32>}, {pipeline_mode = #tpu.pipeline_mode<synchronous>, transform_indices = @transform_6, window_bounds = array<i64: 1, 32>}, {pipeline_mode = #tpu.pipeline_mode<synchronous>, transform_indices = @transform_7, window_bounds = array<i64: 32, 128>}, {pipeline_mode = #tpu.pipeline_mode<synchronous>, transform_indices = @transform_8, window_bounds = array<i64: 1, 128>}, {transform_indices = @transform_9, window_bounds = array<i64: 16, 128>}]} {
    %c0 = arith.constant 0 : index
    %c0_0 = arith.constant 0 : index
    %0 = vector.load %arg1[%c0, %c0_0] : memref<16x32xf32, #tpu.memory_space<vmem>>, vector<16x32xf32>
    %c0_1 = arith.constant 0 : index
    %c0_2 = arith.constant 0 : index
    %1 = vector.load %arg2[%c0_1, %c0_2] : memref<32x32xf32, #tpu.memory_space<vmem>>, vector<32x32xf32>
    %cst = arith.constant dense<0.000000e+00> : vector<16x32xf32>
    %2 = tpu.matmul %0, %1, %cst {dimension_numbers = #tpu.dot_dimension_numbers<[1], [0], [0], [1], [0, 0, 1, 1], [], []>} : vector<16x32xf32>, vector<32x32xf32>, vector<16x32xf32> -> vector<16x32xf32>
    %c0_3 = arith.constant 0 : index
    %c0_4 = arith.constant 0 : index
    %3 = vector.load %arg3[%c0_3, %c0_4] : memref<1x32xf32, #tpu.memory_space<vmem>>, vector<1x32xf32>
    %4 = vector.broadcast %3 : vector<1x32xf32> to vector<16x32xf32>
    %5 = arith.addf %2, %4 : vector<16x32xf32>
    %6 = math.tanh %5 : vector<16x32xf32>
    %c0_5 = arith.constant 0 : index
    %c0_6 = arith.constant 0 : index
    %7 = vector.load %arg4[%c0_5, %c0_6] : memref<32x32xf32, #tpu.memory_space<vmem>>, vector<32x32xf32>
    %cst_7 = arith.constant dense<0.000000e+00> : vector<16x32xf32>
    %8 = tpu.matmul %6, %7, %cst_7 {dimension_numbers = #tpu.dot_dimension_numbers<[1], [0], [0], [1], [0, 0, 1, 1], [], []>} : vector<16x32xf32>, vector<32x32xf32>, vector<16x32xf32> -> vector<16x32xf32>
    %c0_8 = arith.constant 0 : index
    %c0_9 = arith.constant 0 : index
    %9 = vector.load %arg5[%c0_8, %c0_9] : memref<1x32xf32, #tpu.memory_space<vmem>>, vector<1x32xf32>
    %10 = vector.broadcast %9 : vector<1x32xf32> to vector<16x32xf32>
    %11 = arith.addf %8, %10 : vector<16x32xf32>
    %12 = math.tanh %11 : vector<16x32xf32>
    %c0_10 = arith.constant 0 : index
    %c0_11 = arith.constant 0 : index
    %13 = vector.load %arg6[%c0_10, %c0_11] : memref<32x32xf32, #tpu.memory_space<vmem>>, vector<32x32xf32>
    %cst_12 = arith.constant dense<0.000000e+00> : vector<16x32xf32>
    %14 = tpu.matmul %12, %13, %cst_12 {dimension_numbers = #tpu.dot_dimension_numbers<[1], [0], [0], [1], [0, 0, 1, 1], [], []>} : vector<16x32xf32>, vector<32x32xf32>, vector<16x32xf32> -> vector<16x32xf32>
    %c0_13 = arith.constant 0 : index
    %c0_14 = arith.constant 0 : index
    %15 = vector.load %arg7[%c0_13, %c0_14] : memref<1x32xf32, #tpu.memory_space<vmem>>, vector<1x32xf32>
    %16 = vector.broadcast %15 : vector<1x32xf32> to vector<16x32xf32>
    %17 = arith.addf %14, %16 : vector<16x32xf32>
    %18 = math.tanh %17 : vector<16x32xf32>
    %c0_15 = arith.constant 0 : index
    %c0_16 = arith.constant 0 : index
    %19 = vector.load %arg8[%c0_15, %c0_16] : memref<32x128xf32, #tpu.memory_space<vmem>>, vector<32x128xf32>
    %cst_17 = arith.constant dense<0.000000e+00> : vector<16x128xf32>
    %20 = tpu.matmul %18, %19, %cst_17 {dimension_numbers = #tpu.dot_dimension_numbers<[1], [0], [0], [1], [0, 0, 1, 1], [], []>} : vector<16x32xf32>, vector<32x128xf32>, vector<16x128xf32> -> vector<16x128xf32>
    %c0_18 = arith.constant 0 : index
    %c0_19 = arith.constant 0 : index
    %21 = vector.load %arg9[%c0_18, %c0_19] : memref<1x128xf32, #tpu.memory_space<vmem>>, vector<1x128xf32>
    %22 = vector.broadcast %21 : vector<1x128xf32> to vector<16x128xf32>
    %23 = arith.addf %20, %22 : vector<16x128xf32>
    %c0_20 = arith.constant 0 : index
    %c0_21 = arith.constant 0 : index
    %24 = vector.load %arg10[%c0_20, %c0_21] : memref<16x128xf32, #tpu.memory_space<vmem>>, vector<16x128xf32>
    tpu.vector_store %arg10[%c0_20, %c0_21], %23 {strides = array<i32>} : memref<16x128xf32, #tpu.memory_space<vmem>>, vector<16x128xf32>,
    return
  }
  func.func @transform_0(%arg0: i32) -> (i32, i32) {
    %c0_i32 = arith.constant 0 : i32
    %c0_i32_0 = arith.constant 0 : i32
    return %arg0, %c0_i32 : i32, i32
  }
  func.func @transform_1(%arg0: i32) -> (i32, i32) {
    %c0_i32 = arith.constant 0 : i32
    %c0_i32_0 = arith.constant 0 : i32
    %c0_i32_1 = arith.constant 0 : i32
    return %c0_i32, %c0_i32_0 : i32, i32
  }
  func.func @transform_2(%arg0: i32) -> (i32, i32) {
    %c0_i32 = arith.constant 0 : i32
    %c0_i32_0 = arith.constant 0 : i32
    %c0_i32_1 = arith.constant 0 : i32
    return %c0_i32, %c0_i32_0 : i32, i32
  }
  func.func @transform_3(%arg0: i32) -> (i32, i32) {
    %c0_i32 = arith.constant 0 : i32
    %c0_i32_0 = arith.constant 0 : i32
    %c0_i32_1 = arith.constant 0 : i32
    return %c0_i32, %c0_i32_0 : i32, i32
  }
  func.func @transform_4(%arg0: i32) -> (i32, i32) {
    %c0_i32 = arith.constant 0 : i32
    %c0_i32_0 = arith.constant 0 : i32
    %c0_i32_1 = arith.constant 0 : i32
    return %c0_i32, %c0_i32_0 : i32, i32
  }
  func.func @transform_5(%arg0: i32) -> (i32, i32) {
    %c0_i32 = arith.constant 0 : i32
    %c0_i32_0 = arith.constant 0 : i32
    %c0_i32_1 = arith.constant 0 : i32
    return %c0_i32, %c0_i32_0 : i32, i32
  }
  func.func @transform_6(%arg0: i32) -> (i32, i32) {
    %c0_i32 = arith.constant 0 : i32
    %c0_i32_0 = arith.constant 0 : i32
    %c0_i32_1 = arith.constant 0 : i32
    return %c0_i32, %c0_i32_0 : i32, i32
  }
  func.func @transform_7(%arg0: i32) -> (i32, i32) {
    %c0_i32 = arith.constant 0 : i32
    %c0_i32_0 = arith.constant 0 : i32
    %c0_i32_1 = arith.constant 0 : i32
    return %c0_i32, %c0_i32_0 : i32, i32
  }
  func.func @transform_8(%arg0: i32) -> (i32, i32) {
    %c0_i32 = arith.constant 0 : i32
    %c0_i32_0 = arith.constant 0 : i32
    %c0_i32_1 = arith.constant 0 : i32
    return %c0_i32, %c0_i32_0 : i32, i32
  }
  func.func @transform_9(%arg0: i32) -> (i32, i32) {
    %c0_i32 = arith.constant 0 : i32
    %c0_i32_0 = arith.constant 0 : i32
    return %arg0, %c0_i32 : i32, i32
  }
}

</mosaic_0001>

<llo_original>
// kernel: tpu_custom_call.1
$region0: #{tpu_custom_call.1}
  #allocation0 [shape = 'u32[]', space=smem, size = 0x4, offset = 0x4, fixed_abs, tag = 'smem constant byte address 0x4 - core index']
  #allocation1 [shape = 'u32[144,128]{1,0:T(1,128)}', space=vmem, size = 0x12000, scoped, tag = 'internal scratch']
  %s0 = inlined_call_operand.hbm [shape: f32[16,32], index: 0, kind: input, shape index: {}]
  %s1 = inlined_call_operand.hbm [shape: f32[32,32], index: 1, kind: input, shape index: {}]
  %s2 = inlined_call_operand.vmem [shape: f32[1,32], index: 2, kind: input, shape index: {}]
  %s3 = inlined_call_operand.hbm [shape: f32[32,32], index: 3, kind: input, shape index: {}]
  %s4 = inlined_call_operand.vmem [shape: f32[1,32], index: 4, kind: input, shape index: {}]
  %s5 = inlined_call_operand.hbm [shape: f32[32,32], index: 5, kind: input, shape index: {}]
  %s6 = inlined_call_operand.vmem [shape: f32[1,32], index: 6, kind: input, shape index: {}]
  %s7 = inlined_call_operand.hbm [shape: f32[32,128], index: 7, kind: input, shape index: {}]
  %s8 = inlined_call_operand.vmem [shape: f32[1,128], index: 8, kind: input, shape index: {}]
  %s9 = inlined_call_operand.hbm [shape: f32[16,128], index: 9, kind: output, shape index: {}]
  %s10 = sld [smem:[#allocation0]]
  $region66: #{tpu_custom_call.1} parent=0
    _
  %s12 = ssub.s32 1, %s10
  %s13 = scalar_select 0, %s12, %s10
  $region1: #{tpu_custom_call.1} parent=0
    #allocation2 [shape = 'u8[8192]{0}', space=vmem, size = 0x2000, scoped, tag = 'input window, operand 0, single buffered']
    #allocation3 [shape = 's32[1]{0}', space=sflag, size = 0x4, scoped, tag = 'scoped memory for tpu_custom_call.1']
    #allocation4 [shape = 's32[1]{0}', space=sflag, size = 0x4, scoped, tag = 'scoped memory for tpu_custom_call.1']
    #allocation5 [shape = 'u8[16384]{0}', space=vmem, size = 0x4000, scoped, tag = 'input window, operand 1, single buffered']
    #allocation6 [shape = 's32[1]{0}', space=sflag, size = 0x4, scoped, tag = 'scoped memory for tpu_custom_call.1']
    #allocation7 [shape = 'u8[16384]{0}', space=vmem, size = 0x4000, scoped, tag = 'input window, operand 3, single buffered']
    #allocation8 [shape = 'u8[16384]{0}', space=vmem, size = 0x4000, scoped, tag = 'input window, operand 5, single buffered']
    #allocation9 [shape = 's32[1]{0}', space=sflag, size = 0x4, scoped, tag = 'scoped memory for tpu_custom_call.1']
    #allocation10 [shape = 'u8[16384]{0}', space=vmem, size = 0x4000, scoped, tag = 'input window, operand 7, single buffered']
    #allocation11 [shape = 'u8[8192]{0}', space=vmem, size = 0x2000, scoped, tag = 'output window, operand 0, single buffered']
    %14 = vsyncpa [#allocation3], 0
    %15 = vsyncpa [#allocation6], 0
    %16 = vsyncpa [#allocation9], 0
    %17 = vsyncpa [#allocation4], 0
    // Predicated region
    $region2: #{tpu_custom_call.1} parent=1 // pred_check
      _
    $region3: #{tpu_custom_call.1} parent=1 // pred_check_branch
      %19 = sbr.rel (0) target = $region5
    $region4: #{tpu_custom_call.1} parent=1 // pred_region
      %s21 = ssub.s32 256, 256
      %22 = vsyncadd [#allocation3], %s21
      %s23 = sshll.u32 [#allocation2], 4
      %s24 = int_to_ptr.vmem [resolvable:$true] %s23
      %29 = dma.hbm_to_vmem [thread:$0]  %s0, 256, %s24, [#allocation3], 128, 128, 8
    $region5: #{tpu_custom_call.1} parent=1 // pred_fallthru
      _
    // Predicated region
    $region6: #{tpu_custom_call.1} parent=1 // pred_check
      _
    $region7: #{tpu_custom_call.1} parent=1 // pred_check_branch
      %31 = sbr.rel (0) target = $region9
    $region8: #{tpu_custom_call.1} parent=1 // pred_region
      %s33 = ssub.s32 512, 512
      %34 = vsyncadd [#allocation6], %s33
      %s35 = sshll.u32 [#allocation5], 4
      %s36 = int_to_ptr.vmem [resolvable:$true] %s35
      %41 = dma.hbm_to_vmem [thread:$0]  %s1, 512, %s36, [#allocation6], 128, 128, 8
    $region9: #{tpu_custom_call.1} parent=1 // pred_fallthru
      _
    // Predicated region
    $region10: #{tpu_custom_call.1} parent=1 // pred_check
      _
    $region11: #{tpu_custom_call.1} parent=1 // pred_check_branch
      %43 = sbr.rel (0) target = $region13
    $region12: #{tpu_custom_call.1} parent=1 // pred_region
      _
    $region13: #{tpu_custom_call.1} parent=1 // pred_fallthru
      _
    // Predicated region
    $region14: #{tpu_custom_call.1} parent=1 // pred_check
      _
    $region15: #{tpu_custom_call.1} parent=1 // pred_check_branch
      %45 = sbr.rel (0) target = $region17
    $region16: #{tpu_custom_call.1} parent=1 // pred_region
      %s47 = ssub.s32 512, 512
      %48 = vsyncadd [#allocation6], %s47
      %s49 = sshll.u32 [#allocation7], 4
      %s50 = int_to_ptr.vmem [resolvable:$true] %s49
      %55 = dma.hbm_to_vmem [thread:$0]  %s3, 512, %s50, [#allocation6], 128, 128, 8
    $region17: #{tpu_custom_call.1} parent=1 // pred_fallthru
      _
    // Predicated region
    $region18: #{tpu_custom_call.1} parent=1 // pred_check
      _
    $region19: #{tpu_custom_call.1} parent=1 // pred_check_branch
      %57 = sbr.rel (0) target = $region21
    $region20: #{tpu_custom_call.1} parent=1 // pred_region
      _
    $region21: #{tpu_custom_call.1} parent=1 // pred_fallthru
      _
    // Predicated region
    $region22: #{tpu_custom_call.1} parent=1 // pred_check
      _
    $region23: #{tpu_custom_call.1} parent=1 // pred_check_branch
      %59 = sbr.rel (0) target = $region25
    $region24: #{tpu_custom_call.1} parent=1 // pred_region
      %s61 = ssub.s32 512, 512
      %62 = vsyncadd [#allocation9], %s61
      %s63 = sshll.u32 [#allocation8], 4
      %s64 = int_to_ptr.vmem [resolvable:$true] %s63
      %69 = dma.hbm_to_vmem [thread:$0]  %s5, 512, %s64, [#allocation9], 128, 128, 8
    $region25: #{tpu_custom_call.1} parent=1 // pred_fallthru
      _
    // Predicated region
    $region26: #{tpu_custom_call.1} parent=1 // pred_check
      _
    $region27: #{tpu_custom_call.1} parent=1 // pred_check_branch
      %71 = sbr.rel (0) target = $region29
    $region28: #{tpu_custom_call.1} parent=1 // pred_region
      _
    $region29: #{tpu_custom_call.1} parent=1 // pred_fallthru
      _
    // Predicated region
    $region30: #{tpu_custom_call.1} parent=1 // pred_check
      _
    $region31: #{tpu_custom_call.1} parent=1 // pred_check_branch
      %73 = sbr.rel (0) target = $region33
    $region32: #{tpu_custom_call.1} parent=1 // pred_region
      %s75 = ssub.s32 512, 512
      %76 = vsyncadd [#allocation9], %s75
      %s77 = sshll.u32 [#allocation10], 4
      %s78 = int_to_ptr.vmem [resolvable:$true] %s77
      %83 = dma.hbm_to_vmem [thread:$0]  %s7, 512, %s78, [#allocation9], 128, 128, 8
    $region33: #{tpu_custom_call.1} parent=1 // pred_fallthru
      _
    // Predicated region
    $region34: #{tpu_custom_call.1} parent=1 // pred_check
      _
    $region35: #{tpu_custom_call.1} parent=1 // pred_check_branch
      %85 = sbr.rel (0) target = $region37
    $region36: #{tpu_custom_call.1} parent=1 // pred_region
      _
    $region37: #{tpu_custom_call.1} parent=1 // pred_fallthru
      _
    // Predicated region
    $region38: #{tpu_custom_call.1} parent=1 // pred_check
      _
    $region39: #{tpu_custom_call.1} parent=1 // pred_check_branch
      %87 = sbr.rel (0) target = $region41
    $region40: #{tpu_custom_call.1} parent=1 // pred_region
      %88 = dma.done [#allocation3], 256
    $region41: #{tpu_custom_call.1} parent=1 // pred_fallthru
      _
    // Predicated region
    $region42: #{tpu_custom_call.1} parent=1 // pred_check
      _
    $region43: #{tpu_custom_call.1} parent=1 // pred_check_branch
      %90 = sbr.rel (0) target = $region45
    $region44: #{tpu_custom_call.1} parent=1 // pred_region
      %91 = dma.done [#allocation6], 512
    $region45: #{tpu_custom_call.1} parent=1 // pred_fallthru
      _
    // Predicated region
    $region46: #{tpu_custom_call.1} parent=1 // pred_check
      _
    $region47: #{tpu_custom_call.1} parent=1 // pred_check_branch
      %93 = sbr.rel (0) target = $region49
    $region48: #{tpu_custom_call.1} parent=1 // pred_region
      %94 = dma.done [#allocation6], 512
    $region49: #{tpu_custom_call.1} parent=1 // pred_fallthru
      _
    // Predicated region
    $region50: #{tpu_custom_call.1} parent=1 // pred_check
      _
    $region51: #{tpu_custom_call.1} parent=1 // pred_check_branch
      %96 = sbr.rel (0) target = $region53
    $region52: #{tpu_custom_call.1} parent=1 // pred_region
      %97 = dma.done [#allocation9], 512
    $region53: #{tpu_custom_call.1} parent=1 // pred_fallthru
      _
    // Predicated region
    $region54: #{tpu_custom_call.1} parent=1 // pred_check
      _
    $region55: #{tpu_custom_call.1} parent=1 // pred_check_branch
      %99 = sbr.rel (0) target = $region57
    $region56: #{tpu_custom_call.1} parent=1 // pred_region
      %100 = dma.done [#allocation9], 512
    $region57: #{tpu_custom_call.1} parent=1 // pred_fallthru
      _
    %v101 = vld [vmem:[#allocation2] sm:$0xff]
    %v102 = vld [vmem:[#allocation2 + $0x8] sm:$0xff]
    %v103 = vld [vmem:[#allocation5] sm:$0xff]
    %v104 = vld [vmem:[#allocation5 + $0x8] sm:$0xff]
    %v105 = vld [vmem:[#allocation5 + $0x10] sm:$0xff]
    %v106 = vld [vmem:[#allocation5 + $0x18] sm:$0xff]
    %v107 = vld [vmem:[%s2] sm:$0x1]
    %v109 = vlaneseq
    %v110 = vshrl.u32 %v109, 7
    %v111 = vsub.s32 0, %v110
    %v112 = vrot.slane %v107, %v111
    %vm114 = vcmask 261120
    %v116 = vsel %vm114, %v101, 0
    %v119 = vsel %vm114, %v102, 0
    %121 = vmatprep.subr.mxu0 0.0
    %122 = vmatpush1.msra.mxu0 %v103
    %123 = vmatprep.subr.mxu0 0.0
    %124 = vmatpush1.msra.mxu0 %v104
    %125 = vmatprep.subr.mxu0 0.0
    %126 = vmatpush1.msra.mxu0 %v105
    %127 = vmatprep.subr.mxu0 0.0
    %128 = vmatpush1.msra.mxu0 %v106
    %129 = vmatprep.subr.mxu0 0.0
    %130 = vmatpush1.msra.mxu0 0.0
    %131 = vmatprep.subr.mxu0 0.0
    %132 = vmatpush1.msra.mxu0 0.0
    %133 = vmatprep.subr.mxu0 0.0
    %134 = vmatpush1.msra.mxu0 0.0
    %135 = vmatprep.subr.mxu0 0.0
    %136 = vmatpush1.msra.mxu0 0.0
    %137 = vmatprep.subr.mxu0 0.0
    %138 = vmatpush1.msra.mxu0 0.0
    %139 = vmatprep.subr.mxu0 0.0
    %140 = vmatpush1.msra.mxu0 0.0
    %141 = vmatprep.subr.mxu0 0.0
    %142 = vmatpush1.msra.mxu0 0.0
    %143 = vmatprep.subr.mxu0 0.0
    %144 = vmatpush1.msra.mxu0 0.0
    %145 = vmatprep.subr.mxu0 0.0
    %146 = vmatpush1.msra.mxu0 0.0
    %147 = vmatprep.subr.mxu0 0.0
    %148 = vmatpush1.msra.mxu0 0.0
    %149 = vmatprep.subr.mxu0 0.0
    %150 = vmatpush1.msra.mxu0 0.0
    %151 = vmatprep.subr.mxu0 0.0
    %152 = vmatpush1.msra.mxu0 0.0
    %153 = vmatprep.subr.mxu0 0.0
    %154 = vmatpush1.msra.mxu0 0.0
    %155 = vmatprep.subr.mxu0 0.0
    %156 = vmatpush1.msra.mxu0 0.0
    %157 = vmatprep.subr.mxu0 0.0
    %158 = vmatpush1.msra.mxu0 0.0
    %159 = vmatprep.subr.mxu0 0.0
    %160 = vmatpush1.msra.mxu0 0.0
    %161 = vmatprep.subr.mxu0 0.0
    %162 = vmatpush1.msra.mxu0 0.0
    %163 = vmatprep.subr.mxu0 0.0
    %164 = vmatpush1.msra.mxu0 0.0
    %165 = vmatprep.subr.mxu0 0.0
    %166 = vmatpush1.msra.mxu0 0.0
    %167 = vmatprep.subr.mxu0 0.0
    %168 = vmatpush1.msra.mxu0 0.0
    %169 = vmatprep.subr.mxu0 0.0
    %170 = vmatpush1.msra.mxu0 0.0
    %171 = vmatprep.subr.mxu0 0.0
    %172 = vmatpush1.msra.mxu0 0.0
    %173 = vmatprep.subr.mxu0 0.0
    %174 = vmatpush1.msra.mxu0 0.0
    %175 = vmatprep.subr.mxu0 0.0
    %176 = vmatpush1.msra.mxu0 0.0
    %177 = vmatprep.subr.mxu0 0.0
    %178 = vmatpush1.msra.mxu0 0.0
    %179 = vmatprep.subr.mxu0 0.0
    %180 = vmatpush1.msra.mxu0 0.0
    %181 = vmatprep.subr.mxu0 0.0
    %182 = vmatpush1.msra.mxu0 0.0
    %183 = vmatprep.subr.mxu0 0.0
    %184 = vmatpush1.msra.mxu0 0.0
    %185 = vmatprep.mubr.f32.mxu0 0.0
    %186 = vmatmul.mubr.f32.gmra.mrb[0].mxu0 %v116
    %v187 = vpop.f32.mrb[0].mxu0
    %v188 = vadd.f32 %v112, %v187
    %v189 = vpop.f32.mrb[0].mxu0
    %190 = vmatprep.mubr.f32.mxu0 0.0
    %191 = vmatmul.mubr.f32.gmra.mrb[0].mxu0 %v119
    %v192 = vpop.f32.mrb[0].mxu0
    %v193 = vadd.f32 %v112, %v192
    %v194 = vpop.f32.mrb[0].mxu0
    %195 = vdwg.mxu0
    %v196 = vtanh.pop %v188
    %v197 = vtanh.pop %v193
    %v198 = vld [vmem:[#allocation7] sm:$0xff]
    %v199 = vld [vmem:[#allocation7 + $0x8] sm:$0xff]
    %v200 = vld [vmem:[#allocation7 + $0x10] sm:$0xff]
    %v201 = vld [vmem:[#allocation7 + $0x18] sm:$0xff]
    %v202 = vld [vmem:[%s4] sm:$0x1]
    %v204 = vlaneseq
    %v205 = vshrl.u32 %v204, 7
    %v206 = vsub.s32 0, %v205
    %v207 = vrot.slane %v202, %v206
    %v210 = vsel %vm114, %v196, 0
    %v213 = vsel %vm114, %v197, 0
    %215 = vmatprep.subr.mxu0 0.0
    %216 = vmatpush1.msra.mxu0 %v198
    %217 = vmatprep.subr.mxu0 0.0
    %218 = vmatpush1.msra.mxu0 %v199
    %219 = vmatprep.subr.mxu0 0.0
    %220 = vmatpush1.msra.mxu0 %v200
    %221 = vmatprep.subr.mxu0 0.0
    %222 = vmatpush1.msra.mxu0 %v201
    %223 = vmatprep.subr.mxu0 0.0
    %224 = vmatpush1.msra.mxu0 0.0
    %225 = vmatprep.subr.mxu0 0.0
    %226 = vmatpush1.msra.mxu0 0.0
    %227 = vmatprep.subr.mxu0 0.0
    %228 = vmatpush1.msra.mxu0 0.0
    %229 = vmatprep.subr.mxu0 0.0
    %230 = vmatpush1.msra.mxu0 0.0
    %231 = vmatprep.subr.mxu0 0.0
    %232 = vmatpush1.msra.mxu0 0.0
    %233 = vmatprep.subr.mxu0 0.0
    %234 = vmatpush1.msra.mxu0 0.0
    %235 = vmatprep.subr.mxu0 0.0
    %236 = vmatpush1.msra.mxu0 0.0
    %237 = vmatprep.subr.mxu0 0.0
    %238 = vmatpush1.msra.mxu0 0.0
    %239 = vmatprep.subr.mxu0 0.0
    %240 = vmatpush1.msra.mxu0 0.0
    %241 = vmatprep.subr.mxu0 0.0
    %242 = vmatpush1.msra.mxu0 0.0
    %243 = vmatprep.subr.mxu0 0.0
    %244 = vmatpush1.msra.mxu0 0.0
    %245 = vmatprep.subr.mxu0 0.0
    %246 = vmatpush1.msra.mxu0 0.0
    %247 = vmatprep.subr.mxu0 0.0
    %248 = vmatpush1.msra.mxu0 0.0
    %249 = vmatprep.subr.mxu0 0.0
    %250 = vmatpush1.msra.mxu0 0.0
    %251 = vmatprep.subr.mxu0 0.0
    %252 = vmatpush1.msra.mxu0 0.0
    %253 = vmatprep.subr.mxu0 0.0
    %254 = vmatpush1.msra.mxu0 0.0
    %255 = vmatprep.subr.mxu0 0.0
    %256 = vmatpush1.msra.mxu0 0.0
    %257 = vmatprep.subr.mxu0 0.0
    %258 = vmatpush1.msra.mxu0 0.0
    %259 = vmatprep.subr.mxu0 0.0
    %260 = vmatpush1.msra.mxu0 0.0
    %261 = vmatprep.subr.mxu0 0.0
    %262 = vmatpush1.msra.mxu0 0.0
    %263 = vmatprep.subr.mxu0 0.0
    %264 = vmatpush1.msra.mxu0 0.0
    %265 = vmatprep.subr.mxu0 0.0
    %266 = vmatpush1.msra.mxu0 0.0
    %267 = vmatprep.subr.mxu0 0.0
    %268 = vmatpush1.msra.mxu0 0.0
    %269 = vmatprep.subr.mxu0 0.0
    %270 = vmatpush1.msra.mxu0 0.0
    %271 = vmatprep.subr.mxu0 0.0
    %272 = vmatpush1.msra.mxu0 0.0
    %273 = vmatprep.subr.mxu0 0.0
    %274 = vmatpush1.msra.mxu0 0.0
    %275 = vmatprep.subr.mxu0 0.0
    %276 = vmatpush1.msra.mxu0 0.0
    %277 = vmatprep.subr.mxu0 0.0
    %278 = vmatpush1.msra.mxu0 0.0
    %279 = vmatprep.mubr.f32.mxu0 0.0
    %280 = vmatmul.mubr.f32.gmra.mrb[0].mxu0 %v210
    %v281 = vpop.f32.mrb[0].mxu0
    %v282 = vadd.f32 %v207, %v281
    %v283 = vpop.f32.mrb[0].mxu0
    %284 = vmatprep.mubr.f32.mxu0 0.0
    %285 = vmatmul.mubr.f32.gmra.mrb[0].mxu0 %v213
    %v286 = vpop.f32.mrb[0].mxu0
    %v287 = vadd.f32 %v207, %v286
    %v288 = vpop.f32.mrb[0].mxu0
    %289 = vdwg.mxu0
    %v290 = vtanh.pop %v282
    %v291 = vtanh.pop %v287
    %v292 = vld [vmem:[#allocation8] sm:$0xff]
    %v293 = vld [vmem:[#allocation8 + $0x8] sm:$0xff]
    %v294 = vld [vmem:[#allocation8 + $0x10] sm:$0xff]
    %v295 = vld [vmem:[#allocation8 + $0x18] sm:$0xff]
    %v296 = vld [vmem:[%s6] sm:$0x1]
    %v298 = vlaneseq
    %v299 = vshrl.u32 %v298, 7
    %v300 = vsub.s32 0, %v299
    %v301 = vrot.slane %v296, %v300
    %v304 = vsel %vm114, %v290, 0
    %v307 = vsel %vm114, %v291, 0
    %309 = vmatprep.subr.mxu0 0.0
    %310 = vmatpush1.msra.mxu0 %v292
    %311 = vmatprep.subr.mxu0 0.0
    %312 = vmatpush1.msra.mxu0 %v293
    %313 = vmatprep.subr.mxu0 0.0
    %314 = vmatpush1.msra.mxu0 %v294
    %315 = vmatprep.subr.mxu0 0.0
    %316 = vmatpush1.msra.mxu0 %v295
    %317 = vmatprep.subr.mxu0 0.0
    %318 = vmatpush1.msra.mxu0 0.0
    %319 = vmatprep.subr.mxu0 0.0
    %320 = vmatpush1.msra.mxu0 0.0
    %321 = vmatprep.subr.mxu0 0.0
    %322 = vmatpush1.msra.mxu0 0.0
    %323 = vmatprep.subr.mxu0 0.0
    %324 = vmatpush1.msra.mxu0 0.0
    %325 = vmatprep.subr.mxu0 0.0
    %326 = vmatpush1.msra.mxu0 0.0
    %327 = vmatprep.subr.mxu0 0.0
    %328 = vmatpush1.msra.mxu0 0.0
    %329 = vmatprep.subr.mxu0 0.0
    %330 = vmatpush1.msra.mxu0 0.0
    %331 = vmatprep.subr.mxu0 0.0
    %332 = vmatpush1.msra.mxu0 0.0
    %333 = vmatprep.subr.mxu0 0.0
    %334 = vmatpush1.msra.mxu0 0.0
    %335 = vmatprep.subr.mxu0 0.0
    %336 = vmatpush1.msra.mxu0 0.0
    %337 = vmatprep.subr.mxu0 0.0
    %338 = vmatpush1.msra.mxu0 0.0
    %339 = vmatprep.subr.mxu0 0.0
    %340 = vmatpush1.msra.mxu0 0.0
    %341 = vmatprep.subr.mxu0 0.0
    %342 = vmatpush1.msra.mxu0 0.0
    %343 = vmatprep.subr.mxu0 0.0
    %344 = vmatpush1.msra.mxu0 0.0
    %345 = vmatprep.subr.mxu0 0.0
    %346 = vmatpush1.msra.mxu0 0.0
    %347 = vmatprep.subr.mxu0 0.0
    %348 = vmatpush1.msra.mxu0 0.0
    %349 = vmatprep.subr.mxu0 0.0
    %350 = vmatpush1.msra.mxu0 0.0
    %351 = vmatprep.subr.mxu0 0.0
    %352 = vmatpush1.msra.mxu0 0.0
    %353 = vmatprep.subr.mxu0 0.0
    %354 = vmatpush1.msra.mxu0 0.0
    %355 = vmatprep.subr.mxu0 0.0
    %356 = vmatpush1.msra.mxu0 0.0
    %357 = vmatprep.subr.mxu0 0.0
    %358 = vmatpush1.msra.mxu0 0.0
    %359 = vmatprep.subr.mxu0 0.0
    %360 = vmatpush1.msra.mxu0 0.0
    %361 = vmatprep.subr.mxu0 0.0
    %362 = vmatpush1.msra.mxu0 0.0
    %363 = vmatprep.subr.mxu0 0.0
    %364 = vmatpush1.msra.mxu0 0.0
    %365 = vmatprep.subr.mxu0 0.0
    %366 = vmatpush1.msra.mxu0 0.0
    %367 = vmatprep.subr.mxu0 0.0
    %368 = vmatpush1.msra.mxu0 0.0
    %369 = vmatprep.subr.mxu0 0.0
    %370 = vmatpush1.msra.mxu0 0.0
    %371 = vmatprep.subr.mxu0 0.0
    %372 = vmatpush1.msra.mxu0 0.0
    %373 = vmatprep.mubr.f32.mxu0 0.0
    %374 = vmatmul.mubr.f32.gmra.mrb[0].mxu0 %v304
    %v375 = vpop.f32.mrb[0].mxu0
    %v376 = vadd.f32 %v301, %v375
    %v377 = vpop.f32.mrb[0].mxu0
    %378 = vmatprep.mubr.f32.mxu0 0.0
    %379 = vmatmul.mubr.f32.gmra.mrb[0].mxu0 %v307
    %v380 = vpop.f32.mrb[0].mxu0
    %v381 = vadd.f32 %v301, %v380
    %v382 = vpop.f32.mrb[0].mxu0
    %383 = vdwg.mxu0
    %v384 = vtanh.pop %v376
    %v385 = vtanh.pop %v381
    %v386 = vld [vmem:[#allocation10] sm:$0xff]
    %v387 = vld [vmem:[#allocation10 + $0x8] sm:$0xff]
    %v388 = vld [vmem:[#allocation10 + $0x10] sm:$0xff]
    %v389 = vld [vmem:[#allocation10 + $0x18] sm:$0xff]
    %v390 = vld [vmem:[%s8] sm:$0x1]
    %v392 = vlaneseq
    %v393 = vshrl.u32 %v392, 7
    %v394 = vsub.s32 0, %v393
    %v395 = vrot.slane %v390, %v394
    %v398 = vsel %vm114, %v384, 0
    %v401 = vsel %vm114, %v385, 0
    %403 = vmatprep.subr.mxu0 0.0
    %404 = vmatpush1.msra.mxu0 %v386
    %405 = vmatprep.subr.mxu0 0.0
    %406 = vmatpush1.msra.mxu0 %v387
    %407 = vmatprep.subr.mxu0 0.0
    %408 = vmatpush1.msra.mxu0 %v388
    %409 = vmatprep.subr.mxu0 0.0
    %410 = vmatpush1.msra.mxu0 %v389
    %411 = vmatprep.subr.mxu0 0.0
    %412 = vmatpush1.msra.mxu0 0.0
    %413 = vmatprep.subr.mxu0 0.0
    %414 = vmatpush1.msra.mxu0 0.0
    %415 = vmatprep.subr.mxu0 0.0
    %416 = vmatpush1.msra.mxu0 0.0
    %417 = vmatprep.subr.mxu0 0.0
    %418 = vmatpush1.msra.mxu0 0.0
    %419 = vmatprep.subr.mxu0 0.0
    %420 = vmatpush1.msra.mxu0 0.0
    %421 = vmatprep.subr.mxu0 0.0
    %422 = vmatpush1.msra.mxu0 0.0
    %423 = vmatprep.subr.mxu0 0.0
    %424 = vmatpush1.msra.mxu0 0.0
    %425 = vmatprep.subr.mxu0 0.0
    %426 = vmatpush1.msra.mxu0 0.0
    %427 = vmatprep.subr.mxu0 0.0
    %428 = vmatpush1.msra.mxu0 0.0
    %429 = vmatprep.subr.mxu0 0.0
    %430 = vmatpush1.msra.mxu0 0.0
    %431 = vmatprep.subr.mxu0 0.0
    %432 = vmatpush1.msra.mxu0 0.0
    %433 = vmatprep.subr.mxu0 0.0
    %434 = vmatpush1.msra.mxu0 0.0
    %435 = vmatprep.subr.mxu0 0.0
    %436 = vmatpush1.msra.mxu0 0.0
    %437 = vmatprep.subr.mxu0 0.0
    %438 = vmatpush1.msra.mxu0 0.0
    %439 = vmatprep.subr.mxu0 0.0
    %440 = vmatpush1.msra.mxu0 0.0
    %441 = vmatprep.subr.mxu0 0.0
    %442 = vmatpush1.msra.mxu0 0.0
    %443 = vmatprep.subr.mxu0 0.0
    %444 = vmatpush1.msra.mxu0 0.0
    %445 = vmatprep.subr.mxu0 0.0
    %446 = vmatpush1.msra.mxu0 0.0
    %447 = vmatprep.subr.mxu0 0.0
    %448 = vmatpush1.msra.mxu0 0.0
    %449 = vmatprep.subr.mxu0 0.0
    %450 = vmatpush1.msra.mxu0 0.0
    %451 = vmatprep.subr.mxu0 0.0
    %452 = vmatpush1.msra.mxu0 0.0
    %453 = vmatprep.subr.mxu0 0.0
    %454 = vmatpush1.msra.mxu0 0.0
    %455 = vmatprep.subr.mxu0 0.0
    %456 = vmatpush1.msra.mxu0 0.0
    %457 = vmatprep.subr.mxu0 0.0
    %458 = vmatpush1.msra.mxu0 0.0
    %459 = vmatprep.subr.mxu0 0.0
    %460 = vmatpush1.msra.mxu0 0.0
    %461 = vmatprep.subr.mxu0 0.0
    %462 = vmatpush1.msra.mxu0 0.0
    %463 = vmatprep.subr.mxu0 0.0
    %464 = vmatpush1.msra.mxu0 0.0
    %465 = vmatprep.subr.mxu0 0.0
    %466 = vmatpush1.msra.mxu0 0.0
    %467 = vmatprep.mubr.f32.mxu0 0.0
    %468 = vmatmul.mubr.f32.gmra.mrb[0].mxu0 %v398
    %v469 = vpop.f32.mrb[0].mxu0
    %v470 = vadd.f32 %v395, %v469
    %v471 = vpop.f32.mrb[0].mxu0
    %472 = vmatprep.mubr.f32.mxu0 0.0
    %473 = vmatmul.mubr.f32.gmra.mrb[0].mxu0 %v401
    %v474 = vpop.f32.mrb[0].mxu0
    %v475 = vadd.f32 %v395, %v474
    %v476 = vpop.f32.mrb[0].mxu0
    %477 = vdwg.mxu0
    %478 = vst [vmem:[#allocation11] sm:$0xff] %v470
    %479 = vst [vmem:[#allocation11 + $0x8] sm:$0xff] %v475
    // Predicated region
    $region58: #{tpu_custom_call.1} parent=1 // pred_check
      _
    $region59: #{tpu_custom_call.1} parent=1 // pred_check_branch
      %481 = sbr.rel (0) target = $region61
    $region60: #{tpu_custom_call.1} parent=1 // pred_region
      %s483 = ssub.s32 256, 256
      %484 = vsyncadd [#allocation4], %s483
      %s485 = sshll.u32 [#allocation11], 4
      %s486 = int_to_ptr.vmem [resolvable:$true] %s485
      %491 = dma.vmem_to_hbm [thread:$0]  %s486, 256, %s9, [#allocation4], 128, 128, 8
    $region61: #{tpu_custom_call.1} parent=1 // pred_fallthru
      _
    // Predicated region
    $region62: #{tpu_custom_call.1} parent=1 // pred_check
      _
    $region63: #{tpu_custom_call.1} parent=1 // pred_check_branch
      %493 = sbr.rel (0) target = $region65
    $region64: #{tpu_custom_call.1} parent=1 // pred_region
      %494 = dma.done [#allocation4], 256
    $region65: #{tpu_custom_call.1} parent=1 // pred_fallthru
      _
    %495 = vsyncpa [#allocation3], 1
    %496 = vsyncpa [#allocation6], 1
    %497 = vsyncpa [#allocation9], 1
    %498 = vsyncpa [#allocation4], 1

// kernel: tpu_custom_call.1
$region0: #{tpu_custom_call.1}
  #allocation0 [shape = 'u32[]', space=smem, size = 0x4, offset = 0x4, fixed_abs, tag = 'smem constant byte address 0x4 - core index']
  #allocation1 [shape = 'u32[144,128]{1,0:T(1,128)}', space=vmem, size = 0x12000, scoped, tag = 'internal scratch']
  %s0 = inlined_call_operand.hbm [shape: f32[16,32], index: 0, kind: input, shape index: {}]
  %s1 = inlined_call_operand.hbm [shape: f32[32,32], index: 1, kind: input, shape index: {}]
  %s2 = inlined_call_operand.vmem [shape: f32[1,32], index: 2, kind: input, shape index: {}]
  %s3 = inlined_call_operand.hbm [shape: f32[32,32], index: 3, kind: input, shape index: {}]
  %s4 = inlined_call_operand.vmem [shape: f32[1,32], index: 4, kind: input, shape index: {}]
  %s5 = inlined_call_operand.hbm [shape: f32[32,32], index: 5, kind: input, shape index: {}]
  %s6 = inlined_call_operand.vmem [shape: f32[1,32], index: 6, kind: input, shape index: {}]
  %s7 = inlined_call_operand.hbm [shape: f32[32,128], index: 7, kind: input, shape index: {}]
  %s8 = inlined_call_operand.vmem [shape: f32[1,128], index: 8, kind: input, shape index: {}]
  %s9 = inlined_call_operand.hbm [shape: f32[16,128], index: 9, kind: output, shape index: {}]
  %s10 = sld [smem:[#allocation0]]
  $region66: #{tpu_custom_call.1} parent=0
    _
  %s12 = ssub.s32 1, %s10
  %s13 = scalar_select 0, %s12, %s10
  $region1: #{tpu_custom_call.1} parent=0
    #allocation2 [shape = 'u8[8192]{0}', space=vmem, size = 0x2000, scoped, tag = 'input window, operand 0, single buffered']
    #allocation3 [shape = 's32[1]{0}', space=sflag, size = 0x4, scoped, tag = 'scoped memory for tpu_custom_call.1']
    #allocation4 [shape = 's32[1]{0}', space=sflag, size = 0x4, scoped, tag = 'scoped memory for tpu_custom_call.1']
    #allocation5 [shape = 'u8[16384]{0}', space=vmem, size = 0x4000, scoped, tag = 'input window, operand 1, single buffered']
    #allocation6 [shape = 's32[1]{0}', space=sflag, size = 0x4, scoped, tag = 'scoped memory for tpu_custom_call.1']
    #allocation7 [shape = 'u8[16384]{0}', space=vmem, size = 0x4000, scoped, tag = 'input window, operand 3, single buffered']
    #allocation8 [shape = 'u8[16384]{0}', space=vmem, size = 0x4000, scoped, tag = 'input window, operand 5, single buffered']
    #allocation9 [shape = 's32[1]{0}', space=sflag, size = 0x4, scoped, tag = 'scoped memory for tpu_custom_call.1']
    #allocation10 [shape = 'u8[16384]{0}', space=vmem, size = 0x4000, scoped, tag = 'input window, operand 7, single buffered']
    #allocation11 [shape = 'u8[8192]{0}', space=vmem, size = 0x2000, scoped, tag = 'output window, operand 0, single buffered']
    %14 = vsyncpa [#allocation3], 0
    %15 = vsyncpa [#allocation6], 0
    %16 = vsyncpa [#allocation9], 0
    %17 = vsyncpa [#allocation4], 0
    // Predicated region
    $region2: #{tpu_custom_call.1} parent=1 // pred_check
      _
    $region3: #{tpu_custom_call.1} parent=1 // pred_check_branch
      %19 = sbr.rel (0) target = $region5
    $region4: #{tpu_custom_call.1} parent=1 // pred_region
      %s21 = ssub.s32 256, 256
      %22 = vsyncadd [#allocation3], %s21
      %s23 = sshll.u32 [#allocation2], 4
      %s24 = int_to_ptr.vmem [resolvable:$true] %s23
      %29 = dma.hbm_to_vmem [thread:$0]  %s0, 256, %s24, [#allocation3], 128, 128, 8
    $region5: #{tpu_custom_call.1} parent=1 // pred_fallthru
      _
    // Predicated region
    $region6: #{tpu_custom_call.1} parent=1 // pred_check
      _
    $region7: #{tpu_custom_call.1} parent=1 // pred_check_branch
      %31 = sbr.rel (0) target = $region9
    $region8: #{tpu_custom_call.1} parent=1 // pred_region
      %s33 = ssub.s32 512, 512
      %34 = vsyncadd [#allocation6], %s33
      %s35 = sshll.u32 [#allocation5], 4
      %s36 = int_to_ptr.vmem [resolvable:$true] %s35
      %41 = dma.hbm_to_vmem [thread:$0]  %s1, 512, %s36, [#allocation6], 128, 128, 8
    $region9: #{tpu_custom_call.1} parent=1 // pred_fallthru
      _
    // Predicated region
    $region10: #{tpu_custom_call.1} parent=1 // pred_check
      _
    $region11: #{tpu_custom_call.1} parent=1 // pred_check_branch
      %43 = sbr.rel (0) target = $region13
    $region12: #{tpu_custom_call.1} parent=1 // pred_region
      _
    $region13: #{tpu_custom_call.1} parent=1 // pred_fallthru
      _
    // Predicated region
    $region14: #{tpu_custom_call.1} parent=1 // pred_check
      _
    $region15: #{tpu_custom_call.1} parent=1 // pred_check_branch
      %45 = sbr.rel (0) target = $region17
    $region16: #{tpu_custom_call.1} parent=1 // pred_region
      %s47 = ssub.s32 512, 512
      %48 = vsyncadd [#allocation6], %s47
      %s49 = sshll.u32 [#allocation7], 4
      %s50 = int_to_ptr.vmem [resolvable:$true] %s49
      %55 = dma.hbm_to_vmem [thread:$0]  %s3, 512, %s50, [#allocation6], 128, 128, 8
    $region17: #{tpu_custom_call.1} parent=1 // pred_fallthru
      _
    // Predicated region
    $region18: #{tpu_custom_call.1} parent=1 // pred_check
      _
    $region19: #{tpu_custom_call.1} parent=1 // pred_check_branch
      %57 = sbr.rel (0) target = $region21
    $region20: #{tpu_custom_call.1} parent=1 // pred_region
      _
    $region21: #{tpu_custom_call.1} parent=1 // pred_fallthru
      _
    // Predicated region
    $region22: #{tpu_custom_call.1} parent=1 // pred_check
      _
    $region23: #{tpu_custom_call.1} parent=1 // pred_check_branch
      %59 = sbr.rel (0) target = $region25
    $region24: #{tpu_custom_call.1} parent=1 // pred_region
      %s61 = ssub.s32 512, 512
      %62 = vsyncadd [#allocation9], %s61
      %s63 = sshll.u32 [#allocation8], 4
      %s64 = int_to_ptr.vmem [resolvable:$true] %s63
      %69 = dma.hbm_to_vmem [thread:$0]  %s5, 512, %s64, [#allocation9], 128, 128, 8
    $region25: #{tpu_custom_call.1} parent=1 // pred_fallthru
      _
    // Predicated region
    $region26: #{tpu_custom_call.1} parent=1 // pred_check
      _
    $region27: #{tpu_custom_call.1} parent=1 // pred_check_branch
      %71 = sbr.rel (0) target = $region29
    $region28: #{tpu_custom_call.1} parent=1 // pred_region
      _
    $region29: #{tpu_custom_call.1} parent=1 // pred_fallthru
      _
    // Predicated region
    $region30: #{tpu_custom_call.1} parent=1 // pred_check
      _
    $region31: #{tpu_custom_call.1} parent=1 // pred_check_branch
      %73 = sbr.rel (0) target = $region33
    $region32: #{tpu_custom_call.1} parent=1 // pred_region
      %s75 = ssub.s32 512, 512
      %76 = vsyncadd [#allocation9], %s75
      %s77 = sshll.u32 [#allocation10], 4
      %s78 = int_to_ptr.vmem [resolvable:$true] %s77
      %83 = dma.hbm_to_vmem [thread:$0]  %s7, 512, %s78, [#allocation9], 128, 128, 8
    $region33: #{tpu_custom_call.1} parent=1 // pred_fallthru
      _
    // Predicated region
    $region34: #{tpu_custom_call.1} parent=1 // pred_check
      _
    $region35: #{tpu_custom_call.1} parent=1 // pred_check_branch
      %85 = sbr.rel (0) target = $region37
    $region36: #{tpu_custom_call.1} parent=1 // pred_region
      _
    $region37: #{tpu_custom_call.1} parent=1 // pred_fallthru
      _
    // Predicated region
    $region38: #{tpu_custom_call.1} parent=1 // pred_check
      _
    $region39: #{tpu_custom_call.1} parent=1 // pred_check_branch
      %87 = sbr.rel (0) target = $region41
    $region40: #{tpu_custom_call.1} parent=1 // pred_region
      %88 = dma.done [#allocation3], 256
    $region41: #{tpu_custom_call.1} parent=1 // pred_fallthru
      _
    // Predicated region
    $region42: #{tpu_custom_call.1} parent=1 // pred_check
      _
    $region43: #{tpu_custom_call.1} parent=1 // pred_check_branch
      %90 = sbr.rel (0) target = $region45
    $region44: #{tpu_custom_call.1} parent=1 // pred_region
      %91 = dma.done [#allocation6], 512
    $region45: #{tpu_custom_call.1} parent=1 // pred_fallthru
      _
    // Predicated region
    $region46: #{tpu_custom_call.1} parent=1 // pred_check
      _
    $region47: #{tpu_custom_call.1} parent=1 // pred_check_branch
      %93 = sbr.rel (0) target = $region49
    $region48: #{tpu_custom_call.1} parent=1 // pred_region
      %94 = dma.done [#allocation6], 512
    $region49: #{tpu_custom_call.1} parent=1 // pred_fallthru
      _
    // Predicated region
    $region50: #{tpu_custom_call.1} parent=1 // pred_check
      _
    $region51: #{tpu_custom_call.1} parent=1 // pred_check_branch
      %96 = sbr.rel (0) target = $region53
    $region52: #{tpu_custom_call.1} parent=1 // pred_region
      %97 = dma.done [#allocation9], 512
    $region53: #{tpu_custom_call.1} parent=1 // pred_fallthru
      _
    // Predicated region
    $region54: #{tpu_custom_call.1} parent=1 // pred_check
      _
    $region55: #{tpu_custom_call.1} parent=1 // pred_check_branch
      %99 = sbr.rel (0) target = $region57
    $region56: #{tpu_custom_call.1} parent=1 // pred_region
      %100 = dma.done [#allocation9], 512
    $region57: #{tpu_custom_call.1} parent=1 // pred_fallthru
      _
    %v101 = vld [vmem:[#allocation2] sm:$0xff]
    %v102 = vld [vmem:[#allocation2 + $0x8] sm:$0xff]
    %v103 = vld [vmem:[#allocation5] sm:$0xff]
    %v104 = vld [vmem:[#allocation5 + $0x8] sm:$0xff]
    %v105 = vld [vmem:[#allocation5 + $0x10] sm:$0xff]
    %v106 = vld [vmem:[#allocation5 + $0x18] sm:$0xff]
    %v107 = vld [vmem:[%s2] sm:$0x1]
    %v109 = vlaneseq
    %v110 = vshrl.u32 %v109, 7
    %v111 = vsub.s32 0, %v110
    %v112 = vrot.slane %v107, %v111
    %vm114 = vcmask 261120
    %v116 = vsel %vm114, %v101, 0
    %v119 = vsel %vm114, %v102, 0
    %121 = vmatprep.subr.mxu0 0.0
    %122 = vmatpush1.msra.mxu0 %v103
    %123 = vmatprep.subr.mxu0 0.0
    %124 = vmatpush1.msra.mxu0 %v104
    %125 = vmatprep.subr.mxu0 0.0
    %126 = vmatpush1.msra.mxu0 %v105
    %127 = vmatprep.subr.mxu0 0.0
    %128 = vmatpush1.msra.mxu0 %v106
    %129 = vmatprep.subr.mxu0 0.0
    %130 = vmatpush1.msra.mxu0 0.0
    %131 = vmatprep.subr.mxu0 0.0
    %132 = vmatpush1.msra.mxu0 0.0
    %133 = vmatprep.subr.mxu0 0.0
    %134 = vmatpush1.msra.mxu0 0.0
    %135 = vmatprep.subr.mxu0 0.0
    %136 = vmatpush1.msra.mxu0 0.0
    %137 = vmatprep.subr.mxu0 0.0
    %138 = vmatpush1.msra.mxu0 0.0
    %139 = vmatprep.subr.mxu0 0.0
    %140 = vmatpush1.msra.mxu0 0.0
    %141 = vmatprep.subr.mxu0 0.0
    %142 = vmatpush1.msra.mxu0 0.0
    %143 = vmatprep.subr.mxu0 0.0
    %144 = vmatpush1.msra.mxu0 0.0
    %145 = vmatprep.subr.mxu0 0.0
    %146 = vmatpush1.msra.mxu0 0.0
    %147 = vmatprep.subr.mxu0 0.0
    %148 = vmatpush1.msra.mxu0 0.0
    %149 = vmatprep.subr.mxu0 0.0
    %150 = vmatpush1.msra.mxu0 0.0
    %151 = vmatprep.subr.mxu0 0.0
    %152 = vmatpush1.msra.mxu0 0.0
    %153 = vmatprep.subr.mxu0 0.0
    %154 = vmatpush1.msra.mxu0 0.0
    %155 = vmatprep.subr.mxu0 0.0
    %156 = vmatpush1.msra.mxu0 0.0
    %157 = vmatprep.subr.mxu0 0.0
    %158 = vmatpush1.msra.mxu0 0.0
    %159 = vmatprep.subr.mxu0 0.0
    %160 = vmatpush1.msra.mxu0 0.0
    %161 = vmatprep.subr.mxu0 0.0
    %162 = vmatpush1.msra.mxu0 0.0
    %163 = vmatprep.subr.mxu0 0.0
    %164 = vmatpush1.msra.mxu0 0.0
    %165 = vmatprep.subr.mxu0 0.0
    %166 = vmatpush1.msra.mxu0 0.0
    %167 = vmatprep.subr.mxu0 0.0
    %168 = vmatpush1.msra.mxu0 0.0
    %169 = vmatprep.subr.mxu0 0.0
    %170 = vmatpush1.msra.mxu0 0.0
    %171 = vmatprep.subr.mxu0 0.0
    %172 = vmatpush1.msra.mxu0 0.0
    %173 = vmatprep.subr.mxu0 0.0
    %174 = vmatpush1.msra.mxu0 0.0
    %175 = vmatprep.subr.mxu0 0.0
    %176 = vmatpush1.msra.mxu0 0.0
    %177 = vmatprep.subr.mxu0 0.0
    %178 = vmatpush1.msra.mxu0 0.0
    %179 = vmatprep.subr.mxu0 0.0
    %180 = vmatpush1.msra.mxu0 0.0
    %181 = vmatprep.subr.mxu0 0.0
    %182 = vmatpush1.msra.mxu0 0.0
    %183 = vmatprep.subr.mxu0 0.0
    %184 = vmatpush1.msra.mxu0 0.0
    %185 = vmatprep.mubr.f32.mxu0 0.0
    %186 = vmatmul.mubr.f32.gmra.mrb[0].mxu0 %v116
    %v187 = vpop.f32.mrb[0].mxu0
    %v188 = vadd.f32 %v112, %v187
    %v189 = vpop.f32.mrb[0].mxu0
    %190 = vmatprep.mubr.f32.mxu0 0.0
    %191 = vmatmul.mubr.f32.gmra.mrb[0].mxu0 %v119
    %v192 = vpop.f32.mrb[0].mxu0
    %v193 = vadd.f32 %v112, %v192
    %v194 = vpop.f32.mrb[0].mxu0
    %195 = vdwg.mxu0
    %v196 = vtanh.pop %v188
    %v197 = vtanh.pop %v193
    %v198 = vld [vmem:[#allocation7] sm:$0xff]
    %v199 = vld [vmem:[#allocation7 + $0x8] sm:$0xff]
    %v200 = vld [vmem:[#allocation7 + $0x10] sm:$0xff]
    %v201 = vld [vmem:[#allocation7 + $0x18] sm:$0xff]
    %v202 = vld [vmem:[%s4] sm:$0x1]
    %v204 = vlaneseq
    %v205 = vshrl.u32 %v204, 7
    %v206 = vsub.s32 0, %v205
    %v207 = vrot.slane %v202, %v206
    %v210 = vsel %vm114, %v196, 0
    %v213 = vsel %vm114, %v197, 0
    %215 = vmatprep.subr.mxu0 0.0
    %216 = vmatpush1.msra.mxu0 %v198
    %217 = vmatprep.subr.mxu0 0.0
    %218 = vmatpush1.msra.mxu0 %v199
    %219 = vmatprep.subr.mxu0 0.0
    %220 = vmatpush1.msra.mxu0 %v200
    %221 = vmatprep.subr.mxu0 0.0
    %222 = vmatpush1.msra.mxu0 %v201
    %223 = vmatprep.subr.mxu0 0.0
    %224 = vmatpush1.msra.mxu0 0.0
    %225 = vmatprep.subr.mxu0 0.0
    %226 = vmatpush1.msra.mxu0 0.0
    %227 = vmatprep.subr.mxu0 0.0
    %228 = vmatpush1.msra.mxu0 0.0
    %229 = vmatprep.subr.mxu0 0.0
    %230 = vmatpush1.msra.mxu0 0.0
    %231 = vmatprep.subr.mxu0 0.0
    %232 = vmatpush1.msra.mxu0 0.0
    %233 = vmatprep.subr.mxu0 0.0
    %234 = vmatpush1.msra.mxu0 0.0
    %235 = vmatprep.subr.mxu0 0.0
    %236 = vmatpush1.msra.mxu0 0.0
    %237 = vmatprep.subr.mxu0 0.0
    %238 = vmatpush1.msra.mxu0 0.0
    %239 = vmatprep.subr.mxu0 0.0
    %240 = vmatpush1.msra.mxu0 0.0
    %241 = vmatprep.subr.mxu0 0.0
    %242 = vmatpush1.msra.mxu0 0.0
    %243 = vmatprep.subr.mxu0 0.0
    %244 = vmatpush1.msra.mxu0 0.0
    %245 = vmatprep.subr.mxu0 0.0
    %246 = vmatpush1.msra.mxu0 0.0
    %247 = vmatprep.subr.mxu0 0.0
    %248 = vmatpush1.msra.mxu0 0.0
    %249 = vmatprep.subr.mxu0 0.0
    %250 = vmatpush1.msra.mxu0 0.0
    %251 = vmatprep.subr.mxu0 0.0
    %252 = vmatpush1.msra.mxu0 0.0
    %253 = vmatprep.subr.mxu0 0.0
    %254 = vmatpush1.msra.mxu0 0.0
    %255 = vmatprep.subr.mxu0 0.0
    %256 = vmatpush1.msra.mxu0 0.0
    %257 = vmatprep.subr.mxu0 0.0
    %258 = vmatpush1.msra.mxu0 0.0
    %259 = vmatprep.subr.mxu0 0.0
    %260 = vmatpush1.msra.mxu0 0.0
    %261 = vmatprep.subr.mxu0 0.0
    %262 = vmatpush1.msra.mxu0 0.0
    %263 = vmatprep.subr.mxu0 0.0
    %264 = vmatpush1.msra.mxu0 0.0
    %265 = vmatprep.subr.mxu0 0.0
    %266 = vmatpush1.msra.mxu0 0.0
    %267 = vmatprep.subr.mxu0 0.0
    %268 = vmatpush1.msra.mxu0 0.0
    %269 = vmatprep.subr.mxu0 0.0
    %270 = vmatpush1.msra.mxu0 0.0
    %271 = vmatprep.subr.mxu0 0.0
    %272 = vmatpush1.msra.mxu0 0.0
    %273 = vmatprep.subr.mxu0 0.0
    %274 = vmatpush1.msra.mxu0 0.0
    %275 = vmatprep.subr.mxu0 0.0
    %276 = vmatpush1.msra.mxu0 0.0
    %277 = vmatprep.subr.mxu0 0.0
    %278 = vmatpush1.msra.mxu0 0.0
    %279 = vmatprep.mubr.f32.mxu0 0.0
    %280 = vmatmul.mubr.f32.gmra.mrb[0].mxu0 %v210
    %v281 = vpop.f32.mrb[0].mxu0
    %v282 = vadd.f32 %v207, %v281
    %v283 = vpop.f32.mrb[0].mxu0
    %284 = vmatprep.mubr.f32.mxu0 0.0
    %285 = vmatmul.mubr.f32.gmra.mrb[0].mxu0 %v213
    %v286 = vpop.f32.mrb[0].mxu0
    %v287 = vadd.f32 %v207, %v286
    %v288 = vpop.f32.mrb[0].mxu0
    %289 = vdwg.mxu0
    %v290 = vtanh.pop %v282
    %v291 = vtanh.pop %v287
    %v292 = vld [vmem:[#allocation8] sm:$0xff]
    %v293 = vld [vmem:[#allocation8 + $0x8] sm:$0xff]
    %v294 = vld [vmem:[#allocation8 + $0x10] sm:$0xff]
    %v295 = vld [vmem:[#allocation8 + $0x18] sm:$0xff]
    %v296 = vld [vmem:[%s6] sm:$0x1]
    %v298 = vlaneseq
    %v299 = vshrl.u32 %v298, 7
    %v300 = vsub.s32 0, %v299
    %v301 = vrot.slane %v296, %v300
    %v304 = vsel %vm114, %v290, 0
    %v307 = vsel %vm114, %v291, 0
    %309 = vmatprep.subr.mxu0 0.0
    %310 = vmatpush1.msra.mxu0 %v292
    %311 = vmatprep.subr.mxu0 0.0
    %312 = vmatpush1.msra.mxu0 %v293
    %313 = vmatprep.subr.mxu0 0.0
    %314 = vmatpush1.msra.mxu0 %v294
    %315 = vmatprep.subr.mxu0 0.0
    %316 = vmatpush1.msra.mxu0 %v295
    %317 = vmatprep.subr.mxu0 0.0
    %318 = vmatpush1.msra.mxu0 0.0
    %319 = vmatprep.subr.mxu0 0.0
    %320 = vmatpush1.msra.mxu0 0.0
    %321 = vmatprep.subr.mxu0 0.0
    %322 = vmatpush1.msra.mxu0 0.0
    %323 = vmatprep.subr.mxu0 0.0
    %324 = vmatpush1.msra.mxu0 0.0
    %325 = vmatprep.subr.mxu0 0.0
    %326 = vmatpush1.msra.mxu0 0.0
    %327 = vmatprep.subr.mxu0 0.0
    %328 = vmatpush1.msra.mxu0 0.0
    %329 = vmatprep.subr.mxu0 0.0
    %330 = vmatpush1.msra.mxu0 0.0
    %331 = vmatprep.subr.mxu0 0.0
    %332 = vmatpush1.msra.mxu0 0.0
    %333 = vmatprep.subr.mxu0 0.0
    %334 = vmatpush1.msra.mxu0 0.0
    %335 = vmatprep.subr.mxu0 0.0
    %336 = vmatpush1.msra.mxu0 0.0
    %337 = vmatprep.subr.mxu0 0.0
    %338 = vmatpush1.msra.mxu0 0.0
    %339 = vmatprep.subr.mxu0 0.0
    %340 = vmatpush1.msra.mxu0 0.0
    %341 = vmatprep.subr.mxu0 0.0
    %342 = vmatpush1.msra.mxu0 0.0
    %343 = vmatprep.subr.mxu0 0.0
    %344 = vmatpush1.msra.mxu0 0.0
    %345 = vmatprep.subr.mxu0 0.0
    %346 = vmatpush1.msra.mxu0 0.0
    %347 = vmatprep.subr.mxu0 0.0
    %348 = vmatpush1.msra.mxu0 0.0
    %349 = vmatprep.subr.mxu0 0.0
    %350 = vmatpush1.msra.mxu0 0.0
    %351 = vmatprep.subr.mxu0 0.0
    %352 = vmatpush1.msra.mxu0 0.0
    %353 = vmatprep.subr.mxu0 0.0
    %354 = vmatpush1.msra.mxu0 0.0
    %355 = vmatprep.subr.mxu0 0.0
    %356 = vmatpush1.msra.mxu0 0.0
    %357 = vmatprep.subr.mxu0 0.0
    %358 = vmatpush1.msra.mxu0 0.0
    %359 = vmatprep.subr.mxu0 0.0
    %360 = vmatpush1.msra.mxu0 0.0
    %361 = vmatprep.subr.mxu0 0.0
    %362 = vmatpush1.msra.mxu0 0.0
    %363 = vmatprep.subr.mxu0 0.0
    %364 = vmatpush1.msra.mxu0 0.0
    %365 = vmatprep.subr.mxu0 0.0
    %366 = vmatpush1.msra.mxu0 0.0
    %367 = vmatprep.subr.mxu0 0.0
    %368 = vmatpush1.msra.mxu0 0.0
    %369 = vmatprep.subr.mxu0 0.0
    %370 = vmatpush1.msra.mxu0 0.0
    %371 = vmatprep.subr.mxu0 0.0
    %372 = vmatpush1.msra.mxu0 0.0
    %373 = vmatprep.mubr.f32.mxu0 0.0
    %374 = vmatmul.mubr.f32.gmra.mrb[0].mxu0 %v304
    %v375 = vpop.f32.mrb[0].mxu0
    %v376 = vadd.f32 %v301, %v375
    %v377 = vpop.f32.mrb[0].mxu0
    %378 = vmatprep.mubr.f32.mxu0 0.0
    %379 = vmatmul.mubr.f32.gmra.mrb[0].mxu0 %v307
    %v380 = vpop.f32.mrb[0].mxu0
    %v381 = vadd.f32 %v301, %v380
    %v382 = vpop.f32.mrb[0].mxu0
    %383 = vdwg.mxu0
    %v384 = vtanh.pop %v376
    %v385 = vtanh.pop %v381
    %v386 = vld [vmem:[#allocation10] sm:$0xff]
    %v387 = vld [vmem:[#allocation10 + $0x8] sm:$0xff]
    %v388 = vld [vmem:[#allocation10 + $0x10] sm:$0xff]
    %v389 = vld [vmem:[#allocation10 + $0x18] sm:$0xff]
    %v390 = vld [vmem:[%s8] sm:$0x1]
    %v392 = vlaneseq
    %v393 = vshrl.u32 %v392, 7
    %v394 = vsub.s32 0, %v393
    %v395 = vrot.slane %v390, %v394
    %v398 = vsel %vm114, %v384, 0
    %v401 = vsel %vm114, %v385, 0
    %403 = vmatprep.subr.mxu0 0.0
    %404 = vmatpush1.msra.mxu0 %v386
    %405 = vmatprep.subr.mxu0 0.0
    %406 = vmatpush1.msra.mxu0 %v387
    %407 = vmatprep.subr.mxu0 0.0
    %408 = vmatpush1.msra.mxu0 %v388
    %409 = vmatprep.subr.mxu0 0.0
    %410 = vmatpush1.msra.mxu0 %v389
    %411 = vmatprep.subr.mxu0 0.0
    %412 = vmatpush1.msra.mxu0 0.0
    %413 = vmatprep.subr.mxu0 0.0
    %414 = vmatpush1.msra.mxu0 0.0
    %415 = vmatprep.subr.mxu0 0.0
    %416 = vmatpush1.msra.mxu0 0.0
    %417 = vmatprep.subr.mxu0 0.0
    %418 = vmatpush1.msra.mxu0 0.0
    %419 = vmatprep.subr.mxu0 0.0
    %420 = vmatpush1.msra.mxu0 0.0
    %421 = vmatprep.subr.mxu0 0.0
    %422 = vmatpush1.msra.mxu0 0.0
    %423 = vmatprep.subr.mxu0 0.0
    %424 = vmatpush1.msra.mxu0 0.0
    %425 = vmatprep.subr.mxu0 0.0
    %426 = vmatpush1.msra.mxu0 0.0
    %427 = vmatprep.subr.mxu0 0.0
    %428 = vmatpush1.msra.mxu0 0.0
    %429 = vmatprep.subr.mxu0 0.0
    %430 = vmatpush1.msra.mxu0 0.0
    %431 = vmatprep.subr.mxu0 0.0
    %432 = vmatpush1.msra.mxu0 0.0
    %433 = vmatprep.subr.mxu0 0.0
    %434 = vmatpush1.msra.mxu0 0.0
    %435 = vmatprep.subr.mxu0 0.0
    %436 = vmatpush1.msra.mxu0 0.0
    %437 = vmatprep.subr.mxu0 0.0
    %438 = vmatpush1.msra.mxu0 0.0
    %439 = vmatprep.subr.mxu0 0.0
    %440 = vmatpush1.msra.mxu0 0.0
    %441 = vmatprep.subr.mxu0 0.0
    %442 = vmatpush1.msra.mxu0 0.0
    %443 = vmatprep.subr.mxu0 0.0
    %444 = vmatpush1.msra.mxu0 0.0
    %445 = vmatprep.subr.mxu0 0.0
    %446 = vmatpush1.msra.mxu0 0.0
    %447 = vmatprep.subr.mxu0 0.0
    %448 = vmatpush1.msra.mxu0 0.0
    %449 = vmatprep.subr.mxu0 0.0
    %450 = vmatpush1.msra.mxu0 0.0
    %451 = vmatprep.subr.mxu0 0.0
    %452 = vmatpush1.msra.mxu0 0.0
    %453 = vmatprep.subr.mxu0 0.0
    %454 = vmatpush1.msra.mxu0 0.0
    %455 = vmatprep.subr.mxu0 0.0
    %456 = vmatpush1.msra.mxu0 0.0
    %457 = vmatprep.subr.mxu0 0.0
    %458 = vmatpush1.msra.mxu0 0.0
    %459 = vmatprep.subr.mxu0 0.0
    %460 = vmatpush1.msra.mxu0 0.0
    %461 = vmatprep.subr.mxu0 0.0
    %462 = vmatpush1.msra.mxu0 0.0
    %463 = vmatprep.subr.mxu0 0.0
    %464 = vmatpush1.msra.mxu0 0.0
    %465 = vmatprep.subr.mxu0 0.0
    %466 = vmatpush1.msra.mxu0 0.0
    %467 = vmatprep.mubr.f32.mxu0 0.0
    %468 = vmatmul.mubr.f32.gmra.mrb[0].mxu0 %v398
    %v469 = vpop.f32.mrb[0].mxu0
    %v470 = vadd.f32 %v395, %v469
    %v471 = vpop.f32.mrb[0].mxu0
    %472 = vmatprep.mubr.f32.mxu0 0.0
    %473 = vmatmul.mubr.f32.gmra.mrb[0].mxu0 %v401
    %v474 = vpop.f32.mrb[0].mxu0
    %v475 = vadd.f32 %v395, %v474
    %v476 = vpop.f32.mrb[0].mxu0
    %477 = vdwg.mxu0
    %478 = vst [vmem:[#allocation11] sm:$0xff] %v470
    %479 = vst [vmem:[#allocation11 + $0x8] sm:$0xff] %v475
    // Predicated region
    $region58: #{tpu_custom_call.1} parent=1 // pred_check
      _
    $region59: #{tpu_custom_call.1} parent=1 // pred_check_branch
      %481 = sbr.rel (0) target = $region61
    $region60: #{tpu_custom_call.1} parent=1 // pred_region
      %s483 = ssub.s32 256, 256
      %484 = vsyncadd [#allocation4], %s483
      %s485 = sshll.u32 [#allocation11], 4
      %s486 = int_to_ptr.vmem [resolvable:$true] %s485
      %491 = dma.vmem_to_hbm [thread:$0]  %s486, 256, %s9, [#allocation4], 128, 128, 8
    $region61: #{tpu_custom_call.1} parent=1 // pred_fallthru
      _
    // Predicated region
    $region62: #{tpu_custom_call.1} parent=1 // pred_check
      _
    $region63: #{tpu_custom_call.1} parent=1 // pred_check_branch
      %493 = sbr.rel (0) target = $region65
    $region64: #{tpu_custom_call.1} parent=1 // pred_region
      %494 = dma.done [#allocation4], 256
    $region65: #{tpu_custom_call.1} parent=1 // pred_fallthru
      _
    %495 = vsyncpa [#allocation3], 1
    %496 = vsyncpa [#allocation6], 1
    %497 = vsyncpa [#allocation9], 1
    %498 = vsyncpa [#allocation4], 1

</llo_original>
